<compile_context>
chip_gen: v7x
topology: tpu7x:2x2x1
jax: 0.10.0
libtpu: 0.0.40
codegen_flags: <defaults>
</compile_context>

<pallas_src>
import functools

import jax
import jax.numpy as jnp
from jax.experimental import pallas as pl
from jax.experimental.pallas import tpu as pltpu


def _silu(v):
    # Exact SiLU = x * sigmoid(x); exp lowers to the EUP slot.
    return v * (1.0 / (1.0 + jnp.exp(-v)))


# ---------------------------------------------------------------------------
# Fused kernel: avgpool -> (FC+folded-BN+SiLU) x3 -> FC -> broadcast expand
# One grid step per batch tile. Weights are resident (constant index_map).
# ---------------------------------------------------------------------------
def _channel_attention_kernel(x_ref, w0_ref, b0_ref, w1_ref, b1_ref,
                              w2_ref, b2_ref, wl_ref, bl_ref, o_ref,
                              *, fuse_multiply):
    x = x_ref[...]                                       # (Bt, C, HW) f32

    # AdaptiveAvgPool2d(1): the 1/HW scale is pre-folded into w0 on the host,
    # so a plain lane-axis sum suffices.
    pooled = jnp.sum(x, axis=-1)                         # (Bt, C)

    # Tiny MLP as batched GEMMs over the batch tile (BN folded into linears).
    h = _silu(jnp.dot(pooled, w0_ref[...],
                      preferred_element_type=jnp.float32) + b0_ref[...])   # (Bt, hid)
    h = _silu(jnp.dot(h, w1_ref[...],
                      preferred_element_type=jnp.float32) + b1_ref[...])   # (Bt, hid)
    h = _silu(jnp.dot(h, w2_ref[...],
                      preferred_element_type=jnp.float32) + b2_ref[...])   # (Bt, hid)
    gate = jnp.dot(h, wl_ref[...],
                   preferred_element_type=jnp.float32) + bl_ref[...]       # (Bt, C)

    gate3 = gate[:, :, None]                             # (Bt, C, 1)
    if fuse_multiply:
        # Fused consumer variant: out = x * gate (free in VALU under DMA-bound
        # regime). NOT the module's default contract.
        o_ref[...] = x * gate3
    else:
        # Module-faithful: expand_as(x).
        o_ref[...] = jnp.broadcast_to(gate3, x.shape)


# ---------------------------------------------------------------------------
# Wrapper
# ---------------------------------------------------------------------------
def _pick_batch_tile(batch, per_batch_bytes, target_bytes=2 << 20):
    """Largest divisor of `batch` whose block stays ~target_bytes, while keeping
    >= 2 grid steps when possible (v7x megacore)."""
    cap = max(1, target_bytes // max(1, per_batch_bytes))
    if batch >= 2:
        cap = min(cap, batch // 2)
    cap = max(1, int(cap))
    for bt in range(cap, 0, -1):
        if batch % bt == 0:
            return bt
    return 1


def channel_attention(x, folded_params, *, fuse_multiply=False):
    """x: (B, C, H, W) f32.  folded_params: [(w0,b0),(w1,b1),(w2,b2),(wl,bl)]
    with weights (out, in) and biases (out,), eval-mode BN already folded in."""
    B, C, H, W = x.shape
    HW = H * W
    (w0, b0), (w1, b1), (w2, b2), (wl, bl) = folded_params
    hid = w0.shape[0]

    # Host-side prep: transpose weights to (in, out), biases to (1, out), and
    # fold the 1/HW average-pool scale into the first linear.
    w0t = (w0 * jnp.float32(1.0 / HW)).T                 # (C, hid)
    w1t, w2t, wlt = w1.T, w2.T, wl.T                     # (hid,hid),(hid,hid),(hid,C)
    b0r, b1r, b2r, blr = [b.reshape(1, -1) for b in (b0, b1, b2, bl)]

    xf = x.reshape(B, C, HW)
    Bt = _pick_batch_tile(B, C * HW * 4)
    grid = (B // Bt,)

    def _w_spec(arr):
        return pl.BlockSpec(arr.shape, lambda b: (0, 0))

    kernel = functools.partial(_channel_attention_kernel,
                               fuse_multiply=fuse_multiply)

    n_param = sum(int(a.size) for a in (w0t, b0r, w1t, b1r, w2t, b2r, wlt, blr))
    cost = pl.CostEstimate(
        flops=2 * B * (C * hid + 2 * hid * hid + hid * C) + B * C * HW,
        transcendentals=3 * B * hid,
        bytes_accessed=(2 * B * C * HW + n_param) * 4)

    out = pl.pallas_call(
        kernel,
        out_shape=jax.ShapeDtypeStruct((B, C, HW), jnp.float32),
        grid=grid,
        in_specs=[pl.BlockSpec((Bt, C, HW), lambda b: (b, 0, 0)),
                  _w_spec(w0t), _w_spec(b0r),
                  _w_spec(w1t), _w_spec(b1r),
                  _w_spec(w2t), _w_spec(b2r),
                  _w_spec(wlt), _w_spec(blr)],
        out_specs=pl.BlockSpec((Bt, C, HW), lambda b: (b, 0, 0)),
        compiler_params=pltpu.CompilerParams(
            dimension_semantics=("parallel",)),          # batch tiles independent
        cost_estimate=cost,
    )(xf, w0t, b0r, w1t, b1r, w2t, b2r, wlt, blr)

    return out.reshape(B, C, H, W)


# ---------------------------------------------------------------------------
# Parameter construction / BN folding / pure-JAX reference (eval-mode forward)
# ---------------------------------------------------------------------------
def init_params(key, channel, reduction=16, num_layers=3):
    hid = channel // reduction
    dims = [channel] + [hid] * num_layers + [channel]
    keys = iter(jax.random.split(key, 6 * num_layers + 2))
    p = {}
    for i in range(num_layers):
        p[f"fc{i}_w"] = (jax.random.normal(next(keys), (dims[i + 1], dims[i]),
                                           jnp.float32) / jnp.sqrt(dims[i]))
        p[f"fc{i}_b"] = 0.1 * jax.random.normal(next(keys), (dims[i + 1],), jnp.float32)
        p[f"bn{i}_gamma"] = 1.0 + 0.1 * jax.random.normal(next(keys), (dims[i + 1],), jnp.float32)
        p[f"bn{i}_beta"] = 0.1 * jax.random.normal(next(keys), (dims[i + 1],), jnp.float32)
        p[f"bn{i}_mean"] = 0.1 * jax.random.normal(next(keys), (dims[i + 1],), jnp.float32)
        p[f"bn{i}_var"] = 0.5 + jax.random.uniform(next(keys), (dims[i + 1],), jnp.float32)
    p["last_w"] = (jax.random.normal(next(keys), (dims[-1], dims[-2]),
                                     jnp.float32) / jnp.sqrt(dims[-2]))
    p["last_b"] = 0.1 * jax.random.normal(next(keys), (dims[-1],), jnp.float32)
    return p


def fold_bn(p, num_layers=3, eps=1e-5):
    """Fold inference-mode BatchNorm1d into the preceding Linear.
    # TODO(synk): training-mode BatchNorm1d (batch statistics) is not modeled."""
    folded = []
    for i in range(num_layers):
        w, b = p[f"fc{i}_w"], p[f"fc{i}_b"]
        s = p[f"bn{i}_gamma"] / jnp.sqrt(p[f"bn{i}_var"] + eps)
        wf = w * s[:, None]
        bf = (b - p[f"bn{i}_mean"]) * s + p[f"bn{i}_beta"]
        folded.append((wf, bf))
    folded.append((p["last_w"], p["last_b"]))
    return folded


def reference(x, p, num_layers=3, eps=1e-5):
    """Mirrors ChannelAttention.forward with BatchNorm1d in eval mode."""
    B, C, H, W = x.shape
    h = jnp.mean(x, axis=(2, 3))                          # avgpool + flatten
    for i in range(num_layers):
        h = h @ p[f"fc{i}_w"].T + p[f"fc{i}_b"]
        h = ((h - p[f"bn{i}_mean"]) / jnp.sqrt(p[f"bn{i}_var"] + eps)
             * p[f"bn{i}_gamma"] + p[f"bn{i}_beta"])
        h = h / (1.0 + jnp.exp(-h))                       # SiLU
    gate = h @ p["last_w"].T + p["last_b"]                # (B, C)
    return jnp.broadcast_to(gate[:, :, None, None], (B, C, H, W))


if __name__ == "__main__":
    B, C, H, W = 4, 128, 16, 16          # channel=128, reduction=16 -> hidden=8
    reduction, num_layers = 16, 3

    key = jax.random.PRNGKey(0)
    kx, kp = jax.random.split(key)
    x = jax.random.normal(kx, (B, C, H, W), jnp.float32)
    params = init_params(kp, C, reduction, num_layers)
    folded = fold_bn(params, num_layers)

    # Module-faithful output (expanded gate).
    out = jax.block_until_ready(channel_attention(x, folded))
    ref = reference(x, params, num_layers)
    assert out.shape == (B, C, H, W)
    max_err = float(jnp.max(jnp.abs(out - ref)))
    assert jnp.allclose(out, ref, atol=1e-4, rtol=1e-4), max_err

    # Optional fused-consumer variant: out = x * gate.
    out_f = jax.block_until_ready(channel_attention(x, folded, fuse_multiply=True))
    ref_f = x * ref
    max_err_f = float(jnp.max(jnp.abs(out_f - ref_f)))
    assert jnp.allclose(out_f, ref_f, atol=1e-3, rtol=1e-3), max_err_f

    print("KERNEL_OK")
</pallas_src>

<mosaic_0001>
module attributes {stable_mosaic.version = 11 : i64} {
  func.func @_channel_attention_kernel(%arg0: i32, %arg1: memref<2x128x256xf32, #tpu.memory_space<vmem>>, %arg2: memref<128x8xf32, #tpu.memory_space<vmem>>, %arg3: memref<1x8xf32, #tpu.memory_space<vmem>>, %arg4: memref<8x8xf32, #tpu.memory_space<vmem>>, %arg5: memref<1x8xf32, #tpu.memory_space<vmem>>, %arg6: memref<8x8xf32, #tpu.memory_space<vmem>>, %arg7: memref<1x8xf32, #tpu.memory_space<vmem>>, %arg8: memref<8x128xf32, #tpu.memory_space<vmem>>, %arg9: memref<1x128xf32, #tpu.memory_space<vmem>>, %arg10: memref<2x128x256xf32, #tpu.memory_space<vmem>>) attributes {dimension_semantics = [#tpu.dimension_semantics<parallel>], iteration_bounds = array<i64: 2>, scalar_prefetch = 0 : i64, scratch_operands = 0 : i64, tpu.core_type = #tpu.core_type<tc>, window_params = [{transform_indices = @transform_0, window_bounds = array<i64: 2, 128, 256>}, {pipeline_mode = #tpu.pipeline_mode<synchronous>, transform_indices = @transform_1, window_bounds = array<i64: 128, 8>}, {pipeline_mode = #tpu.pipeline_mode<synchronous>, transform_indices = @transform_2, window_bounds = array<i64: 1, 8>}, {pipeline_mode = #tpu.pipeline_mode<synchronous>, transform_indices = @transform_3, window_bounds = array<i64: 8, 8>}, {pipeline_mode = #tpu.pipeline_mode<synchronous>, transform_indices = @transform_4, window_bounds = array<i64: 1, 8>}, {pipeline_mode = #tpu.pipeline_mode<synchronous>, transform_indices = @transform_5, window_bounds = array<i64: 8, 8>}, {pipeline_mode = #tpu.pipeline_mode<synchronous>, transform_indices = @transform_6, window_bounds = array<i64: 1, 8>}, {pipeline_mode = #tpu.pipeline_mode<synchronous>, transform_indices = @transform_7, window_bounds = array<i64: 8, 128>}, {pipeline_mode = #tpu.pipeline_mode<synchronous>, transform_indices = @transform_8, window_bounds = array<i64: 1, 128>}, {transform_indices = @transform_9, window_bounds = array<i64: 2, 128, 256>}]} {
    %c0 = arith.constant 0 : index
    %c0_0 = arith.constant 0 : index
    %c0_1 = arith.constant 0 : index
    %0 = vector.load %arg1[%c0, %c0_0, %c0_1] : memref<2x128x256xf32, #tpu.memory_space<vmem>>, vector<2x128x256xf32>
    %cst = arith.constant dense<0.000000e+00> : vector<2x128xf32>
    %1 = vector.multi_reduction <add>, %0, %cst [2] : vector<2x128x256xf32> to vector<2x128xf32>
    %c0_2 = arith.constant 0 : index
    %c0_3 = arith.constant 0 : index
    %2 = vector.load %arg2[%c0_2, %c0_3] : memref<128x8xf32, #tpu.memory_space<vmem>>, vector<128x8xf32>
    %cst_4 = arith.constant dense<0.000000e+00> : vector<2x8xf32>
    %3 = tpu.matmul %1, %2, %cst_4 {dimension_numbers = #tpu.dot_dimension_numbers<[1], [0], [0], [1], [0, 0, 1, 1], [], []>} : vector<2x128xf32>, vector<128x8xf32>, vector<2x8xf32> -> vector<2x8xf32>
    %c0_5 = arith.constant 0 : index
    %c0_6 = arith.constant 0 : index
    %4 = vector.load %arg3[%c0_5, %c0_6] : memref<1x8xf32, #tpu.memory_space<vmem>>, vector<1x8xf32>
    %5 = vector.broadcast %4 : vector<1x8xf32> to vector<2x8xf32>
    %6 = arith.addf %3, %5 : vector<2x8xf32>
    %cst_7 = arith.constant 0.000000e+00 : f32
    %7 = vector.broadcast %cst_7 : f32 to vector<2x8xf32>
    %8 = arith.subf %7, %6 : vector<2x8xf32>
    %9 = math.exp %8 : vector<2x8xf32>
    %cst_8 = arith.constant 1.000000e+00 : f32
    %10 = vector.broadcast %cst_8 : f32 to vector<2x8xf32>
    %11 = arith.addf %10, %9 : vector<2x8xf32>
    %cst_9 = arith.constant 1.000000e+00 : f32
    %12 = vector.broadcast %cst_9 : f32 to vector<2x8xf32>
    %13 = arith.divf %12, %11 : vector<2x8xf32>
    %14 = arith.mulf %6, %13 : vector<2x8xf32>
    %c0_10 = arith.constant 0 : index
    %c0_11 = arith.constant 0 : index
    %15 = vector.load %arg4[%c0_10, %c0_11] : memref<8x8xf32, #tpu.memory_space<vmem>>, vector<8x8xf32>
    %cst_12 = arith.constant dense<0.000000e+00> : vector<2x8xf32>
    %16 = tpu.matmul %14, %15, %cst_12 {dimension_numbers = #tpu.dot_dimension_numbers<[1], [0], [0], [1], [0, 0, 1, 1], [], []>} : vector<2x8xf32>, vector<8x8xf32>, vector<2x8xf32> -> vector<2x8xf32>
    %c0_13 = arith.constant 0 : index
    %c0_14 = arith.constant 0 : index
    %17 = vector.load %arg5[%c0_13, %c0_14] : memref<1x8xf32, #tpu.memory_space<vmem>>, vector<1x8xf32>
    %18 = vector.broadcast %17 : vector<1x8xf32> to vector<2x8xf32>
    %19 = arith.addf %16, %18 : vector<2x8xf32>
    %cst_15 = arith.constant 0.000000e+00 : f32
    %20 = vector.broadcast %cst_15 : f32 to vector<2x8xf32>
    %21 = arith.subf %20, %19 : vector<2x8xf32>
    %22 = math.exp %21 : vector<2x8xf32>
    %cst_16 = arith.constant 1.000000e+00 : f32
    %23 = vector.broadcast %cst_16 : f32 to vector<2x8xf32>
    %24 = arith.addf %23, %22 : vector<2x8xf32>
    %cst_17 = arith.constant 1.000000e+00 : f32
    %25 = vector.broadcast %cst_17 : f32 to vector<2x8xf32>
    %26 = arith.divf %25, %24 : vector<2x8xf32>
    %27 = arith.mulf %19, %26 : vector<2x8xf32>
    %c0_18 = arith.constant 0 : index
    %c0_19 = arith.constant 0 : index
    %28 = vector.load %arg6[%c0_18, %c0_19] : memref<8x8xf32, #tpu.memory_space<vmem>>, vector<8x8xf32>
    %cst_20 = arith.constant dense<0.000000e+00> : vector<2x8xf32>
    %29 = tpu.matmul %27, %28, %cst_20 {dimension_numbers = #tpu.dot_dimension_numbers<[1], [0], [0], [1], [0, 0, 1, 1], [], []>} : vector<2x8xf32>, vector<8x8xf32>, vector<2x8xf32> -> vector<2x8xf32>
    %c0_21 = arith.constant 0 : index
    %c0_22 = arith.constant 0 : index
    %30 = vector.load %arg7[%c0_21, %c0_22] : memref<1x8xf32, #tpu.memory_space<vmem>>, vector<1x8xf32>
    %31 = vector.broadcast %30 : vector<1x8xf32> to vector<2x8xf32>
    %32 = arith.addf %29, %31 : vector<2x8xf32>
    %cst_23 = arith.constant 0.000000e+00 : f32
    %33 = vector.broadcast %cst_23 : f32 to vector<2x8xf32>
    %34 = arith.subf %33, %32 : vector<2x8xf32>
    %35 = math.exp %34 : vector<2x8xf32>
    %cst_24 = arith.constant 1.000000e+00 : f32
    %36 = vector.broadcast %cst_24 : f32 to vector<2x8xf32>
    %37 = arith.addf %36, %35 : vector<2x8xf32>
    %cst_25 = arith.constant 1.000000e+00 : f32
    %38 = vector.broadcast %cst_25 : f32 to vector<2x8xf32>
    %39 = arith.divf %38, %37 : vector<2x8xf32>
    %40 = arith.mulf %32, %39 : vector<2x8xf32>
    %c0_26 = arith.constant 0 : index
    %c0_27 = arith.constant 0 : index
    %41 = vector.load %arg8[%c0_26, %c0_27] : memref<8x128xf32, #tpu.memory_space<vmem>>, vector<8x128xf32>
    %cst_28 = arith.constant dense<0.000000e+00> : vector<2x128xf32>
    %42 = tpu.matmul %40, %41, %cst_28 {dimension_numbers = #tpu.dot_dimension_numbers<[1], [0], [0], [1], [0, 0, 1, 1], [], []>} : vector<2x8xf32>, vector<8x128xf32>, vector<2x128xf32> -> vector<2x128xf32>
    %c0_29 = arith.constant 0 : index
    %c0_30 = arith.constant 0 : index
    %43 = vector.load %arg9[%c0_29, %c0_30] : memref<1x128xf32, #tpu.memory_space<vmem>>, vector<1x128xf32>
    %44 = vector.broadcast %43 : vector<1x128xf32> to vector<2x128xf32>
    %45 = arith.addf %42, %44 : vector<2x128xf32>
    %46 = vector.shape_cast %45 : vector<2x128xf32> to vector<2x128x1xf32>
    %47 = vector.shape_cast %46 : vector<2x128x1xf32> to vector<2x128x1xf32>
    %48 = vector.broadcast %47 : vector<2x128x1xf32> to vector<2x128x256xf32>
    %c0_31 = arith.constant 0 : index
    %c0_32 = arith.constant 0 : index
    %c0_33 = arith.constant 0 : index
    %49 = vector.load %arg10[%c0_31, %c0_32, %c0_33] : memref<2x128x256xf32, #tpu.memory_space<vmem>>, vector<2x128x256xf32>
    tpu.vector_store %arg10[%c0_31, %c0_32, %c0_33], %48 {strides = array<i32>} : memref<2x128x256xf32, #tpu.memory_space<vmem>>, vector<2x128x256xf32>,
    return
  }
  func.func @transform_0(%arg0: i32) -> (i32, i32, i32) {
    %c0_i32 = arith.constant 0 : i32
    %c0_i32_0 = arith.constant 0 : i32
    %c0_i32_1 = arith.constant 0 : i32
    return %arg0, %c0_i32, %c0_i32_0 : i32, i32, i32
  }
  func.func @transform_1(%arg0: i32) -> (i32, i32) {
    %c0_i32 = arith.constant 0 : i32
    %c0_i32_0 = arith.constant 0 : i32
    %c0_i32_1 = arith.constant 0 : i32
    return %c0_i32, %c0_i32_0 : i32, i32
  }
  func.func @transform_2(%arg0: i32) -> (i32, i32) {
    %c0_i32 = arith.constant 0 : i32
    %c0_i32_0 = arith.constant 0 : i32
    %c0_i32_1 = arith.constant 0 : i32
    return %c0_i32, %c0_i32_0 : i32, i32
  }
  func.func @transform_3(%arg0: i32) -> (i32, i32) {
    %c0_i32 = arith.constant 0 : i32
    %c0_i32_0 = arith.constant 0 : i32
    %c0_i32_1 = arith.constant 0 : i32
    return %c0_i32, %c0_i32_0 : i32, i32
  }
  func.func @transform_4(%arg0: i32) -> (i32, i32) {
    %c0_i32 = arith.constant 0 : i32
    %c0_i32_0 = arith.constant 0 : i32
    %c0_i32_1 = arith.constant 0 : i32
    return %c0_i32, %c0_i32_0 : i32, i32
  }
  func.func @transform_5(%arg0: i32) -> (i32, i32) {
    %c0_i32 = arith.constant 0 : i32
    %c0_i32_0 = arith.constant 0 : i32
    %c0_i32_1 = arith.constant 0 : i32
    return %c0_i32, %c0_i32_0 : i32, i32
  }
  func.func @transform_6(%arg0: i32) -> (i32, i32) {
    %c0_i32 = arith.constant 0 : i32
    %c0_i32_0 = arith.constant 0 : i32
    %c0_i32_1 = arith.constant 0 : i32
    return %c0_i32, %c0_i32_0 : i32, i32
  }
  func.func @transform_7(%arg0: i32) -> (i32, i32) {
    %c0_i32 = arith.constant 0 : i32
    %c0_i32_0 = arith.constant 0 : i32
    %c0_i32_1 = arith.constant 0 : i32
    return %c0_i32, %c0_i32_0 : i32, i32
  }
  func.func @transform_8(%arg0: i32) -> (i32, i32) {
    %c0_i32 = arith.constant 0 : i32
    %c0_i32_0 = arith.constant 0 : i32
    %c0_i32_1 = arith.constant 0 : i32
    return %c0_i32, %c0_i32_0 : i32, i32
  }
  func.func @transform_9(%arg0: i32) -> (i32, i32, i32) {
    %c0_i32 = arith.constant 0 : i32
    %c0_i32_0 = arith.constant 0 : i32
    %c0_i32_1 = arith.constant 0 : i32
    return %arg0, %c0_i32, %c0_i32_0 : i32, i32, i32
  }
}

</mosaic_0001>

<llo_original>
// kernel: tpu_custom_call.1
$region0: #{tpu_custom_call.1}
  #allocation0 [shape = 'u32[]', space=smem, size = 0x4, offset = 0x4, fixed_abs, tag = 'smem constant byte address 0x4 - core index']
  #allocation1 [shape = 'u32[144,128]{1,0:T(1,128)}', space=vmem, size = 0x12000, scoped, tag = 'internal scratch']
  %s0 = inlined_call_operand.hbm [shape: f32[4,128,256], index: 0, kind: input, shape index: {}]
  %s1 = inlined_call_operand.vmem [shape: f32[128,8], index: 1, kind: input, shape index: {}]
  %s2 = inlined_call_operand.vmem [shape: f32[1,8], index: 2, kind: input, shape index: {}]
  %s3 = inlined_call_operand.vmem [shape: f32[8,8], index: 3, kind: input, shape index: {}]
  %s4 = inlined_call_operand.vmem [shape: f32[1,8], index: 4, kind: input, shape index: {}]
  %s5 = inlined_call_operand.vmem [shape: f32[8,8], index: 5, kind: input, shape index: {}]
  %s6 = inlined_call_operand.vmem [shape: f32[1,8], index: 6, kind: input, shape index: {}]
  %s7 = inlined_call_operand.vmem [shape: f32[8,128], index: 7, kind: input, shape index: {}]
  %s8 = inlined_call_operand.vmem [shape: f32[1,128], index: 8, kind: input, shape index: {}]
  %s9 = inlined_call_operand.hbm [shape: f32[4,128,256], index: 9, kind: output, shape index: {}]
  %s10 = sld [smem:[#allocation0]]
  $region73: #{tpu_custom_call.1} parent=0
    _
  %s12 = ssub.s32 1, %s10
  %s13 = scalar_select 0, %s12, %s10
  $region1: #{tpu_custom_call.1} parent=0
    #allocation2 [shape = 'u8[524288]{0}', space=vmem, size = 0x80000, scoped, tag = 'input window, operand 0']
    #allocation3 [shape = 's32[2]{0}', space=sflag, size = 0x8, scoped, tag = 'scoped memory for tpu_custom_call.1']
    #allocation4 [shape = 's32[2]{0}', space=sflag, size = 0x8, scoped, tag = 'scoped memory for tpu_custom_call.1']
    #allocation5 [shape = 'u8[524288]{0}', space=vmem, size = 0x80000, scoped, tag = 'output window, operand 0']
    %14 = vsyncpa [#allocation3], 0
    %s15 = scalar_lea.sflag [#allocation3], 1
    %16 = vsyncpa %s15, 0
    %17 = vsyncpa [#allocation4], 0
    %s18 = scalar_lea.sflag [#allocation4], 1
    %19 = vsyncpa %s18, 0
    loop: start=0, step=1, limit=4
    $region2: #{tpu_custom_call.1} parent=1 // loop_pre_header
      _
    $region3: #{tpu_custom_call.1} parent=1 // loop_header
      %s21 = sphi 0, %s25
      %p22 = scmp.ge.s32.totalorder %s21, 4
      %s31 = sphi 0, %s33
      %s34 = sphi 0, %s31
      %s35 = sphi 0, %s34
      %s51 = sphi 0, %s35
      %s55 = sphi 0, %s55
      %s57 = sphi 0, %s55
      %s58 = sphi 0, %s57
      %s72 = sphi 0, %s58
      %s76 = sphi 0, %s76
      %s78 = sphi 0, %s76
      %s79 = sphi 0, %s78
      %s93 = sphi 0, %s79
      %s97 = sphi 0, %s97
      %s99 = sphi 0, %s97
      %s100 = sphi 0, %s99
      %s114 = sphi 0, %s100
      %s118 = sphi 0, %s118
      %s120 = sphi 0, %s118
      %s121 = sphi 0, %s120
      %s135 = sphi 0, %s121
      %s139 = sphi 0, %s139
      %s141 = sphi 0, %s139
      %s142 = sphi 0, %s141
      %s156 = sphi 0, %s142
      %s160 = sphi 0, %s160
      %s162 = sphi 0, %s160
      %s163 = sphi 0, %s162
      %s177 = sphi 0, %s163
      %s181 = sphi 0, %s181
      %s183 = sphi 0, %s181
      %s184 = sphi 0, %s183
      %s198 = sphi 0, %s184
      %s202 = sphi 0, %s202
      %s204 = sphi 0, %s202
      %s205 = sphi 0, %s204
      %s219 = sphi 0, %s205
      %s225 = sphi 0, %s227
      %s228 = sphi 0, %s225
      %s229 = sphi 0, %s228
      %s245 = sphi 0, %s229
    $region4: #{tpu_custom_call.1} parent=1 // loop_header_branch
      %24 = sbr.rel (%p22) target = $region8
    $region5: #{tpu_custom_call.1} parent=1 // loop_body
      %s26 = ssub.s32 %s21, 1
      %s27 = ssub.s32 %s21, 2
      %s28 = sadd.s32 %s21, 1
      %s29 = ssub.s32 %s21, %s28
      %p30 = scmp.eq.s32.totalorder %s29, 0
      %s32 = sadd.s32 %s31, 1
      %s33 = scalar_select %p30, %s31, %s32
      %p36 = pneg %p30
      %p37 = scmp.eq.s32.totalorder %s21, 1
      %p38 = por %p36, %p37
      %p39 = scmp.ne.s32.totalorder %s31, %s34
      %p40 = scmp.eq.s32.totalorder %s21, 0
      %p41 = por %p39, %p40
      %p42 = scmp.ne.s32.totalorder %s31, %s34
      %p43 = scmp.eq.s32.totalorder %s26, 1
      %p44 = por %p42, %p43
      %p45 = scmp.ne.s32.totalorder %s34, %s35
      %p46 = scmp.eq.s32.totalorder %s26, 0
      %p47 = por %p45, %p46
      %p48 = scmp.ne.s32.totalorder %s34, %s35
      %p49 = scmp.eq.s32.totalorder %s27, 1
      %p50 = por %p48, %p49
      %p52 = scmp.ne.s32.totalorder %s35, %s51
      %p53 = scmp.eq.s32.totalorder %s27, 0
      %p54 = por %p52, %p53
      %s56 = sadd.s32 %s55, 1
      %p59 = scmp.eq.s32.totalorder %s21, 1
      %p60 = scmp.ne.s32.totalorder %s55, %s57
      %p61 = scmp.eq.s32.totalorder %s21, 0
      %p62 = por %p60, %p61
      %p63 = scmp.ne.s32.totalorder %s55, %s57
      %p64 = scmp.eq.s32.totalorder %s26, 1
      %p65 = por %p63, %p64
      %p66 = scmp.ne.s32.totalorder %s57, %s58
      %p67 = scmp.eq.s32.totalorder %s26, 0
      %p68 = por %p66, %p67
      %p69 = scmp.ne.s32.totalorder %s57, %s58
      %p70 = scmp.eq.s32.totalorder %s27, 1
      %p71 = por %p69, %p70
      %p73 = scmp.ne.s32.totalorder %s58, %s72
      %p74 = scmp.eq.s32.totalorder %s27, 0
      %p75 = por %p73, %p74
      %s77 = sadd.s32 %s76, 1
      %p80 = scmp.eq.s32.totalorder %s21, 1
      %p81 = scmp.ne.s32.totalorder %s76, %s78
      %p82 = scmp.eq.s32.totalorder %s21, 0
      %p83 = por %p81, %p82
      %p84 = scmp.ne.s32.totalorder %s76, %s78
      %p85 = scmp.eq.s32.totalorder %s26, 1
      %p86 = por %p84, %p85
      %p87 = scmp.ne.s32.totalorder %s78, %s79
      %p88 = scmp.eq.s32.totalorder %s26, 0
      %p89 = por %p87, %p88
      %p90 = scmp.ne.s32.totalorder %s78, %s79
      %p91 = scmp.eq.s32.totalorder %s27, 1
      %p92 = por %p90, %p91
      %p94 = scmp.ne.s32.totalorder %s79, %s93
      %p95 = scmp.eq.s32.totalorder %s27, 0
      %p96 = por %p94, %p95
      %s98 = sadd.s32 %s97, 1
      %p101 = scmp.eq.s32.totalorder %s21, 1
      %p102 = scmp.ne.s32.totalorder %s97, %s99
      %p103 = scmp.eq.s32.totalorder %s21, 0
      %p104 = por %p102, %p103
      %p105 = scmp.ne.s32.totalorder %s97, %s99
      %p106 = scmp.eq.s32.totalorder %s26, 1
      %p107 = por %p105, %p106
      %p108 = scmp.ne.s32.totalorder %s99, %s100
      %p109 = scmp.eq.s32.totalorder %s26, 0
      %p110 = por %p108, %p109
      %p111 = scmp.ne.s32.totalorder %s99, %s100
      %p112 = scmp.eq.s32.totalorder %s27, 1
      %p113 = por %p111, %p112
      %p115 = scmp.ne.s32.totalorder %s100, %s114
      %p116 = scmp.eq.s32.totalorder %s27, 0
      %p117 = por %p115, %p116
      %s119 = sadd.s32 %s118, 1
      %p122 = scmp.eq.s32.totalorder %s21, 1
      %p123 = scmp.ne.s32.totalorder %s118, %s120
      %p124 = scmp.eq.s32.totalorder %s21, 0
      %p125 = por %p123, %p124
      %p126 = scmp.ne.s32.totalorder %s118, %s120
      %p127 = scmp.eq.s32.totalorder %s26, 1
      %p128 = por %p126, %p127
      %p129 = scmp.ne.s32.totalorder %s120, %s121
      %p130 = scmp.eq.s32.totalorder %s26, 0
      %p131 = por %p129, %p130
      %p132 = scmp.ne.s32.totalorder %s120, %s121
      %p133 = scmp.eq.s32.totalorder %s27, 1
      %p134 = por %p132, %p133
      %p136 = scmp.ne.s32.totalorder %s121, %s135
      %p137 = scmp.eq.s32.totalorder %s27, 0
      %p138 = por %p136, %p137
      %s140 = sadd.s32 %s139, 1
      %p143 = scmp.eq.s32.totalorder %s21, 1
      %p144 = scmp.ne.s32.totalorder %s139, %s141
      %p145 = scmp.eq.s32.totalorder %s21, 0
      %p146 = por %p144, %p145
      %p147 = scmp.ne.s32.totalorder %s139, %s141
      %p148 = scmp.eq.s32.totalorder %s26, 1
      %p149 = por %p147, %p148
      %p150 = scmp.ne.s32.totalorder %s141, %s142
      %p151 = scmp.eq.s32.totalorder %s26, 0
      %p152 = por %p150, %p151
      %p153 = scmp.ne.s32.totalorder %s141, %s142
      %p154 = scmp.eq.s32.totalorder %s27, 1
      %p155 = por %p153, %p154
      %p157 = scmp.ne.s32.totalorder %s142, %s156
      %p158 = scmp.eq.s32.totalorder %s27, 0
      %p159 = por %p157, %p158
      %s161 = sadd.s32 %s160, 1
      %p164 = scmp.eq.s32.totalorder %s21, 1
      %p165 = scmp.ne.s32.totalorder %s160, %s162
      %p166 = scmp.eq.s32.totalorder %s21, 0
      %p167 = por %p165, %p166
      %p168 = scmp.ne.s32.totalorder %s160, %s162
      %p169 = scmp.eq.s32.totalorder %s26, 1
      %p170 = por %p168, %p169
      %p171 = scmp.ne.s32.totalorder %s162, %s163
      %p172 = scmp.eq.s32.totalorder %s26, 0
      %p173 = por %p171, %p172
      %p174 = scmp.ne.s32.totalorder %s162, %s163
      %p175 = scmp.eq.s32.totalorder %s27, 1
      %p176 = por %p174, %p175
      %p178 = scmp.ne.s32.totalorder %s163, %s177
      %p179 = scmp.eq.s32.totalorder %s27, 0
      %p180 = por %p178, %p179
      %s182 = sadd.s32 %s181, 1
      %p185 = scmp.eq.s32.totalorder %s21, 1
      %p186 = scmp.ne.s32.totalorder %s181, %s183
      %p187 = scmp.eq.s32.totalorder %s21, 0
      %p188 = por %p186, %p187
      %p189 = scmp.ne.s32.totalorder %s181, %s183
      %p190 = scmp.eq.s32.totalorder %s26, 1
      %p191 = por %p189, %p190
      %p192 = scmp.ne.s32.totalorder %s183, %s184
      %p193 = scmp.eq.s32.totalorder %s26, 0
      %p194 = por %p192, %p193
      %p195 = scmp.ne.s32.totalorder %s183, %s184
      %p196 = scmp.eq.s32.totalorder %s27, 1
      %p197 = por %p195, %p196
      %p199 = scmp.ne.s32.totalorder %s184, %s198
      %p200 = scmp.eq.s32.totalorder %s27, 0
      %p201 = por %p199, %p200
      %s203 = sadd.s32 %s202, 1
      %p206 = scmp.eq.s32.totalorder %s21, 1
      %p207 = scmp.ne.s32.totalorder %s202, %s204
      %p208 = scmp.eq.s32.totalorder %s21, 0
      %p209 = por %p207, %p208
      %p210 = scmp.ne.s32.totalorder %s202, %s204
      %p211 = scmp.eq.s32.totalorder %s26, 1
      %p212 = por %p210, %p211
      %p213 = scmp.ne.s32.totalorder %s204, %s205
      %p214 = scmp.eq.s32.totalorder %s26, 0
      %p215 = por %p213, %p214
      %p216 = scmp.ne.s32.totalorder %s204, %s205
      %p217 = scmp.eq.s32.totalorder %s27, 1
      %p218 = por %p216, %p217
      %p220 = scmp.ne.s32.totalorder %s205, %s219
      %p221 = scmp.eq.s32.totalorder %s27, 0
      %p222 = por %p220, %p221
      %s223 = ssub.s32 %s21, %s28
      %p224 = scmp.eq.s32.totalorder %s223, 0
      %s226 = sadd.s32 %s225, 1
      %s227 = scalar_select %p224, %s225, %s226
      %p230 = pneg %p224
      %p231 = scmp.eq.s32.totalorder %s21, 1
      %p232 = por %p230, %p231
      %p233 = scmp.ne.s32.totalorder %s225, %s228
      %p234 = scmp.eq.s32.totalorder %s21, 0
      %p235 = por %p233, %p234
      %p236 = scmp.ne.s32.totalorder %s225, %s228
      %p237 = scmp.eq.s32.totalorder %s26, 1
      %p238 = por %p236, %p237
      %p239 = scmp.ne.s32.totalorder %s228, %s229
      %p240 = scmp.eq.s32.totalorder %s26, 0
      %p241 = por %p239, %p240
      %p242 = scmp.ne.s32.totalorder %s228, %s229
      %p243 = scmp.eq.s32.totalorder %s27, 1
      %p244 = por %p242, %p243
      %p246 = scmp.ne.s32.totalorder %s229, %s245
      %p247 = scmp.eq.s32.totalorder %s27, 0
      %p248 = por %p246, %p247
      %p249 = scmp.le.s32.totalorder 1, %s21
      %p250 = scmp.lt.s32.totalorder %s21, 3
      %p251 = pnand %p249, %p250
      %p252 = pneg %p251
      // Predicated region
      $region9: #{tpu_custom_call.1} parent=5 // pred_check
        _
      $region10: #{tpu_custom_call.1} parent=5 // pred_check_branch
        %254 = sbr.rel (%p251) target = $region12
      $region11: #{tpu_custom_call.1} parent=5 // pred_region
        %s255 = ssub.s32 %s21, 1
        // Predicated region
        $region13: #{tpu_custom_call.1} parent=11 // pred_check
          %p256 = pneg %p68
        $region14: #{tpu_custom_call.1} parent=11 // pred_check_branch
          %258 = sbr.rel (%p256) target = $region16
        $region15: #{tpu_custom_call.1} parent=11 // pred_region
          _
        $region16: #{tpu_custom_call.1} parent=11 // pred_fallthru
          _
        // Predicated region
        $region17: #{tpu_custom_call.1} parent=11 // pred_check
          %p259 = pneg %p89
        $region18: #{tpu_custom_call.1} parent=11 // pred_check_branch
          %261 = sbr.rel (%p259) target = $region20
        $region19: #{tpu_custom_call.1} parent=11 // pred_region
          _
        $region20: #{tpu_custom_call.1} parent=11 // pred_fallthru
          _
        // Predicated region
        $region21: #{tpu_custom_call.1} parent=11 // pred_check
          %p262 = pneg %p110
        $region22: #{tpu_custom_call.1} parent=11 // pred_check_branch
          %264 = sbr.rel (%p262) target = $region24
        $region23: #{tpu_custom_call.1} parent=11 // pred_region
          _
        $region24: #{tpu_custom_call.1} parent=11 // pred_fallthru
          _
        // Predicated region
        $region25: #{tpu_custom_call.1} parent=11 // pred_check
          %p265 = pneg %p131
        $region26: #{tpu_custom_call.1} parent=11 // pred_check_branch
          %267 = sbr.rel (%p265) target = $region28
        $region27: #{tpu_custom_call.1} parent=11 // pred_region
          _
        $region28: #{tpu_custom_call.1} parent=11 // pred_fallthru
          _
        // Predicated region
        $region29: #{tpu_custom_call.1} parent=11 // pred_check
          %p268 = pneg %p152
        $region30: #{tpu_custom_call.1} parent=11 // pred_check_branch
          %270 = sbr.rel (%p268) target = $region32
        $region31: #{tpu_custom_call.1} parent=11 // pred_region
          _
        $region32: #{tpu_custom_call.1} parent=11 // pred_fallthru
          _
        // Predicated region
        $region33: #{tpu_custom_call.1} parent=11 // pred_check
          %p271 = pneg %p173
        $region34: #{tpu_custom_call.1} parent=11 // pred_check_branch
          %273 = sbr.rel (%p271) target = $region36
        $region35: #{tpu_custom_call.1} parent=11 // pred_region
          _
        $region36: #{tpu_custom_call.1} parent=11 // pred_fallthru
          _
        // Predicated region
        $region37: #{tpu_custom_call.1} parent=11 // pred_check
          %p274 = pneg %p194
        $region38: #{tpu_custom_call.1} parent=11 // pred_check_branch
          %276 = sbr.rel (%p274) target = $region40
        $region39: #{tpu_custom_call.1} parent=11 // pred_region
          _
        $region40: #{tpu_custom_call.1} parent=11 // pred_fallthru
          _
        // Predicated region
        $region41: #{tpu_custom_call.1} parent=11 // pred_check
          %p277 = pneg %p215
        $region42: #{tpu_custom_call.1} parent=11 // pred_check_branch
          %279 = sbr.rel (%p277) target = $region44
        $region43: #{tpu_custom_call.1} parent=11 // pred_region
          _
        $region44: #{tpu_custom_call.1} parent=11 // pred_fallthru
          _
      $region12: #{tpu_custom_call.1} parent=5 // pred_fallthru
        _
      %p280 = scmp.lt.s32.totalorder %s21, 2
      // Predicated region
      $region45: #{tpu_custom_call.1} parent=5 // pred_check
        %p281 = pneg %p280
      $region46: #{tpu_custom_call.1} parent=5 // pred_check_branch
        %283 = sbr.rel (%p281) target = $region48
      $region47: #{tpu_custom_call.1} parent=5 // pred_region
        // Predicated region
        $region49: #{tpu_custom_call.1} parent=47 // pred_check
          %p284 = pneg %p41
        $region50: #{tpu_custom_call.1} parent=47 // pred_check_branch
          %286 = sbr.rel (%p284) target = $region52
        $region51: #{tpu_custom_call.1} parent=47 // pred_region
          %s287 = sand.u32 %s31, 1
          %s288 = scalar_lea.sflag [#allocation3], %s287
          %s289 = sand.u32 %s31, 1
          %s290 = smul.addr %s289, 512
          %s291 = scalar_lea.vmem [#allocation2], %s290
          %s292 = smul.u32 2, %s21
          %s294 = ssub.s32 8192, 8192
          %295 = vsyncadd %s288, %s294
          %s296 = smul.addr %s292, 32
          %s297 = smul.addr %s296, 128
          %s298 = scalar_lea.hbm %s0, %s297
          %s299 = sshll.u32 %s291, 4
          %s300 = int_to_ptr.vmem [resolvable:$true] %s299
          %305 = dma.hbm_to_vmem [thread:$0]  %s298, 8192, %s300, %s288, 256, 256, 16
        $region52: #{tpu_custom_call.1} parent=47 // pred_fallthru
          _
      $region48: #{tpu_custom_call.1} parent=5 // pred_fallthru
        _
      %p306 = scmp.le.s32.totalorder 1, %s21
      %p307 = scmp.lt.s32.totalorder %s21, 3
      %p308 = pnand %p306, %p307
      %p309 = pneg %p308
      // Predicated region
      $region53: #{tpu_custom_call.1} parent=5 // pred_check
        _
      $region54: #{tpu_custom_call.1} parent=5 // pred_check_branch
        %311 = sbr.rel (%p308) target = $region56
      $region55: #{tpu_custom_call.1} parent=5 // pred_region
        %s312 = ssub.s32 %s21, 1
        %s313 = sand.u32 %s34, 1
        %s314 = scalar_lea.sflag [#allocation3], %s313
        %s315 = sand.u32 %s34, 1
        %s316 = smul.addr %s315, 512
        %s317 = scalar_lea.vmem [#allocation2], %s316
        // Predicated region
        $region57: #{tpu_custom_call.1} parent=55 // pred_check
          %p318 = pneg %p47
        $region58: #{tpu_custom_call.1} parent=55 // pred_check_branch
          %320 = sbr.rel (%p318) target = $region60
        $region59: #{tpu_custom_call.1} parent=55 // pred_region
          %321 = dma.done %s314, 8192
        $region60: #{tpu_custom_call.1} parent=55 // pred_fallthru
          _
        %s322 = sand.u32 %s34, 1
        %s323 = scalar_lea.sflag [#allocation3], %s322
        %s324 = sand.u32 %s34, 1
        %s325 = smul.addr %s324, 512
        %s326 = scalar_lea.vmem [#allocation2], %s325
        %p327 = pneg %p47
        %p328 = pneg %p44
        %p329 = pneg %p68
        %p330 = pneg %p65
        %p331 = pneg %p89
        %p332 = pneg %p86
        %p333 = pneg %p110
        %p334 = pneg %p107
        %p335 = pneg %p131
        %p336 = pneg %p128
        %p337 = pneg %p152
        %p338 = pneg %p149
        %p339 = pneg %p173
        %p340 = pneg %p170
        %p341 = pneg %p194
        %p342 = pneg %p191
        %p343 = pneg %p215
        %p344 = pneg %p212
        %p345 = pneg %p241
        %p346 = pneg %p238
        %s347 = sand.u32 %s228, 1
        %s348 = scalar_lea.sflag [#allocation4], %s347
        %s349 = sand.u32 %s228, 1
        %s350 = smul.addr %s349, 512
        %s351 = scalar_lea.vmem [#allocation5], %s350
        %s352 = smul.u32 2, %s26
        %s353 = smul.u32 2, %s26
        %v354 = vld [vmem:[%s317] sm:$0xff]
        %v355 = vld [vmem:[%s317 + $0x8] sm:$0xff]
        %v356 = vld [vmem:[%s317 + $0x10] sm:$0xff]
        %v357 = vld [vmem:[%s317 + $0x18] sm:$0xff]
        %v358 = vld [vmem:[%s317 + $0x20] sm:$0xff]
        %v359 = vld [vmem:[%s317 + $0x28] sm:$0xff]
        %v360 = vld [vmem:[%s317 + $0x30] sm:$0xff]
        %v361 = vld [vmem:[%s317 + $0x38] sm:$0xff]
        %v362 = vld [vmem:[%s317 + $0x40] sm:$0xff]
        %v363 = vld [vmem:[%s317 + $0x48] sm:$0xff]
        %v364 = vld [vmem:[%s317 + $0x50] sm:$0xff]
        %v365 = vld [vmem:[%s317 + $0x58] sm:$0xff]
        %v366 = vld [vmem:[%s317 + $0x60] sm:$0xff]
        %v367 = vld [vmem:[%s317 + $0x68] sm:$0xff]
        %v368 = vld [vmem:[%s317 + $0x70] sm:$0xff]
        %v369 = vld [vmem:[%s317 + $0x78] sm:$0xff]
        %v370 = vld [vmem:[%s317 + $0x80] sm:$0xff]
        %v371 = vld [vmem:[%s317 + $0x88] sm:$0xff]
        %v372 = vld [vmem:[%s317 + $0x90] sm:$0xff]
        %v373 = vld [vmem:[%s317 + $0x98] sm:$0xff]
        %v374 = vld [vmem:[%s317 + $0xa0] sm:$0xff]
        %v375 = vld [vmem:[%s317 + $0xa8] sm:$0xff]
        %v376 = vld [vmem:[%s317 + $0xb0] sm:$0xff]
        %v377 = vld [vmem:[%s317 + $0xb8] sm:$0xff]
        %v378 = vld [vmem:[%s317 + $0xc0] sm:$0xff]
        %v379 = vld [vmem:[%s317 + $0xc8] sm:$0xff]
        %v380 = vld [vmem:[%s317 + $0xd0] sm:$0xff]
        %v381 = vld [vmem:[%s317 + $0xd8] sm:$0xff]
        %v382 = vld [vmem:[%s317 + $0xe0] sm:$0xff]
        %v383 = vld [vmem:[%s317 + $0xe8] sm:$0xff]
        %v384 = vld [vmem:[%s317 + $0xf0] sm:$0xff]
        %v385 = vld [vmem:[%s317 + $0xf8] sm:$0xff]
        %v386 = vld [vmem:[%s317 + $0x100] sm:$0xff]
        %v387 = vld [vmem:[%s317 + $0x108] sm:$0xff]
        %v388 = vld [vmem:[%s317 + $0x110] sm:$0xff]
        %v389 = vld [vmem:[%s317 + $0x118] sm:$0xff]
        %v390 = vld [vmem:[%s317 + $0x120] sm:$0xff]
        %v391 = vld [vmem:[%s317 + $0x128] sm:$0xff]
        %v392 = vld [vmem:[%s317 + $0x130] sm:$0xff]
        %v393 = vld [vmem:[%s317 + $0x138] sm:$0xff]
        %v394 = vld [vmem:[%s317 + $0x140] sm:$0xff]
        %v395 = vld [vmem:[%s317 + $0x148] sm:$0xff]
        %v396 = vld [vmem:[%s317 + $0x150] sm:$0xff]
        %v397 = vld [vmem:[%s317 + $0x158] sm:$0xff]
        %v398 = vld [vmem:[%s317 + $0x160] sm:$0xff]
        %v399 = vld [vmem:[%s317 + $0x168] sm:$0xff]
        %v400 = vld [vmem:[%s317 + $0x170] sm:$0xff]
        %v401 = vld [vmem:[%s317 + $0x178] sm:$0xff]
        %v402 = vld [vmem:[%s317 + $0x180] sm:$0xff]
        %v403 = vld [vmem:[%s317 + $0x188] sm:$0xff]
        %v404 = vld [vmem:[%s317 + $0x190] sm:$0xff]
        %v405 = vld [vmem:[%s317 + $0x198] sm:$0xff]
        %v406 = vld [vmem:[%s317 + $0x1a0] sm:$0xff]
        %v407 = vld [vmem:[%s317 + $0x1a8] sm:$0xff]
        %v408 = vld [vmem:[%s317 + $0x1b0] sm:$0xff]
        %v409 = vld [vmem:[%s317 + $0x1b8] sm:$0xff]
        %v410 = vld [vmem:[%s317 + $0x1c0] sm:$0xff]
        %v411 = vld [vmem:[%s317 + $0x1c8] sm:$0xff]
        %v412 = vld [vmem:[%s317 + $0x1d0] sm:$0xff]
        %v413 = vld [vmem:[%s317 + $0x1d8] sm:$0xff]
        %v414 = vld [vmem:[%s317 + $0x1e0] sm:$0xff]
        %v415 = vld [vmem:[%s317 + $0x1e8] sm:$0xff]
        %v416 = vld [vmem:[%s317 + $0x1f0] sm:$0xff]
        %v417 = vld [vmem:[%s317 + $0x1f8] sm:$0xff]
        %v418 = vadd.f32 %v354, %v355
        %419 = vadd.xlane.f32.xlu0 %v418
        %v420 = vpop.xlane.xlu0 %419
        %v421 = vadd.f32 %v356, %v357
        %422 = vadd.xlane.f32.xlu0 %v421
        %v423 = vpop.xlane.xlu0 %422
        %v424 = vadd.f32 %v358, %v359
        %425 = vadd.xlane.f32.xlu0 %v424
        %v426 = vpop.xlane.xlu0 %425
        %v427 = vadd.f32 %v360, %v361
        %428 = vadd.xlane.f32.xlu0 %v427
        %v429 = vpop.xlane.xlu0 %428
        %v430 = vadd.f32 %v362, %v363
        %431 = vadd.xlane.f32.xlu0 %v430
        %v432 = vpop.xlane.xlu0 %431
        %v433 = vadd.f32 %v364, %v365
        %434 = vadd.xlane.f32.xlu0 %v433
        %v435 = vpop.xlane.xlu0 %434
        %v436 = vadd.f32 %v366, %v367
        %437 = vadd.xlane.f32.xlu0 %v436
        %v438 = vpop.xlane.xlu0 %437
        %v439 = vadd.f32 %v368, %v369
        %440 = vadd.xlane.f32.xlu0 %v439
        %v441 = vpop.xlane.xlu0 %440
        %v442 = vadd.f32 %v370, %v371
        %443 = vadd.xlane.f32.xlu0 %v442
        %v444 = vpop.xlane.xlu0 %443
        %v445 = vadd.f32 %v372, %v373
        %446 = vadd.xlane.f32.xlu0 %v445
        %v447 = vpop.xlane.xlu0 %446
        %v448 = vadd.f32 %v374, %v375
        %449 = vadd.xlane.f32.xlu0 %v448
        %v450 = vpop.xlane.xlu0 %449
        %v451 = vadd.f32 %v376, %v377
        %452 = vadd.xlane.f32.xlu0 %v451
        %v453 = vpop.xlane.xlu0 %452
        %v454 = vadd.f32 %v378, %v379
        %455 = vadd.xlane.f32.xlu0 %v454
        %v456 = vpop.xlane.xlu0 %455
        %v457 = vadd.f32 %v380, %v381
        %458 = vadd.xlane.f32.xlu0 %v457
        %v459 = vpop.xlane.xlu0 %458
        %v460 = vadd.f32 %v382, %v383
        %461 = vadd.xlane.f32.xlu0 %v460
        %v462 = vpop.xlane.xlu0 %461
        %v463 = vadd.f32 %v384, %v385
        %464 = vadd.xlane.f32.xlu0 %v463
        %v465 = vpop.xlane.xlu0 %464
        %v466 = vadd.f32 %v386, %v387
        %467 = vadd.xlane.f32.xlu0 %v466
        %v468 = vpop.xlane.xlu0 %467
        %v469 = vadd.f32 %v388, %v389
        %470 = vadd.xlane.f32.xlu0 %v469
        %v471 = vpop.xlane.xlu0 %470
        %v472 = vadd.f32 %v390, %v391
        %473 = vadd.xlane.f32.xlu0 %v472
        %v474 = vpop.xlane.xlu0 %473
        %v475 = vadd.f32 %v392, %v393
        %476 = vadd.xlane.f32.xlu0 %v475
        %v477 = vpop.xlane.xlu0 %476
        %v478 = vadd.f32 %v394, %v395
        %479 = vadd.xlane.f32.xlu0 %v478
        %v480 = vpop.xlane.xlu0 %479
        %v481 = vadd.f32 %v396, %v397
        %482 = vadd.xlane.f32.xlu0 %v481
        %v483 = vpop.xlane.xlu0 %482
        %v484 = vadd.f32 %v398, %v399
        %485 = vadd.xlane.f32.xlu0 %v484
        %v486 = vpop.xlane.xlu0 %485
        %v487 = vadd.f32 %v400, %v401
        %488 = vadd.xlane.f32.xlu0 %v487
        %v489 = vpop.xlane.xlu0 %488
        %v490 = vadd.f32 %v402, %v403
        %491 = vadd.xlane.f32.xlu0 %v490
        %v492 = vpop.xlane.xlu0 %491
        %v493 = vadd.f32 %v404, %v405
        %494 = vadd.xlane.f32.xlu0 %v493
        %v495 = vpop.xlane.xlu0 %494
        %v496 = vadd.f32 %v406, %v407
        %497 = vadd.xlane.f32.xlu0 %v496
        %v498 = vpop.xlane.xlu0 %497
        %v499 = vadd.f32 %v408, %v409
        %500 = vadd.xlane.f32.xlu0 %v499
        %v501 = vpop.xlane.xlu0 %500
        %v502 = vadd.f32 %v410, %v411
        %503 = vadd.xlane.f32.xlu0 %v502
        %v504 = vpop.xlane.xlu0 %503
        %v505 = vadd.f32 %v412, %v413
        %506 = vadd.xlane.f32.xlu0 %v505
        %v507 = vpop.xlane.xlu0 %506
        %v508 = vadd.f32 %v414, %v415
        %509 = vadd.xlane.f32.xlu0 %v508
        %v510 = vpop.xlane.xlu0 %509
        %v511 = vadd.f32 %v416, %v417
        %512 = vadd.xlane.f32.xlu0 %v511
        %v513 = vpop.xlane.xlu0 %512
        %v514 = vld [vmem:[%s1] sm:$0xff]
        %v515 = vld [vmem:[%s1 + $0x8] sm:$0xff]
        %v516 = vld [vmem:[%s1 + $0x10] sm:$0xff]
        %v517 = vld [vmem:[%s1 + $0x18] sm:$0xff]
        %v518 = vld [vmem:[%s1 + $0x20] sm:$0xff]
        %v519 = vld [vmem:[%s1 + $0x28] sm:$0xff]
        %v520 = vld [vmem:[%s1 + $0x30] sm:$0xff]
        %v521 = vld [vmem:[%s1 + $0x38] sm:$0xff]
        %v522 = vld [vmem:[%s1 + $0x40] sm:$0xff]
        %v523 = vld [vmem:[%s1 + $0x48] sm:$0xff]
        %v524 = vld [vmem:[%s1 + $0x50] sm:$0xff]
        %v525 = vld [vmem:[%s1 + $0x58] sm:$0xff]
        %v526 = vld [vmem:[%s1 + $0x60] sm:$0xff]
        %v527 = vld [vmem:[%s1 + $0x68] sm:$0xff]
        %v528 = vld [vmem:[%s1 + $0x70] sm:$0xff]
        %v529 = vld [vmem:[%s1 + $0x78] sm:$0xff]
        %v530 = vld [vmem:[%s2] sm:$0x1]
        %v532 = vlaneseq
        %v533 = vshrl.u32 %v532, 7
        %v534 = vsub.s32 0, %v533
        %v535 = vrot.slane %v530, %v534
        %v569 = vlaneseq
        %v570 = vand.u32 %v569, 127
        %v571 = vlaneseq
        %v572 = vshrl.u32 %v571, 7
        %v573 = vsub.s32 %v570, %v572
        %v574 = vrot.slane %v420, %v573
        %v575 = vadd.s32 %v570, 4294967288
        %v576 = vlaneseq
        %v577 = vshrl.u32 %v576, 7
        %v578 = vsub.s32 %v575, %v577
        %v579 = vrot.slane %v423, %v578
        %vm580 = vcmask 130112
        %v581 = vsel %vm580, %v579, %v574
        %v582 = vadd.s32 %v570, 4294967280
        %v583 = vlaneseq
        %v584 = vshrl.u32 %v583, 7
        %v585 = vsub.s32 %v582, %v584
        %v586 = vrot.slane %v426, %v585
        %vm587 = vcmask 195712
        %v588 = vsel %vm587, %v586, %v581
        %v589 = vadd.s32 %v570, 4294967272
        %v590 = vlaneseq
        %v591 = vshrl.u32 %v590, 7
        %v592 = vsub.s32 %v589, %v591
        %v593 = vrot.slane %v429, %v592
        %vm594 = vcmask 261312
        %v595 = vsel %vm594, %v593, %v588
        %v596 = vadd.s32 %v570, 4294967264
        %v597 = vlaneseq
        %v598 = vshrl.u32 %v597, 7
        %v599 = vsub.s32 %v596, %v598
        %v600 = vrot.slane %v432, %v599
        %vm601 = vcmask 326912
        %v602 = vsel %vm601, %v600, %v595
        %v603 = vadd.s32 %v570, 4294967256
        %v604 = vlaneseq
        %v605 = vshrl.u32 %v604, 7
        %v606 = vsub.s32 %v603, %v605
        %v607 = vrot.slane %v435, %v606
        %vm608 = vcmask 392512
        %v609 = vsel %vm608, %v607, %v602
        %v610 = vadd.s32 %v570, 4294967248
        %v611 = vlaneseq
        %v612 = vshrl.u32 %v611, 7
        %v613 = vsub.s32 %v610, %v612
        %v614 = vrot.slane %v438, %v613
        %vm615 = vcmask 458112
        %v616 = vsel %vm615, %v614, %v609
        %v617 = vadd.s32 %v570, 4294967240
        %v618 = vlaneseq
        %v619 = vshrl.u32 %v618, 7
        %v620 = vsub.s32 %v617, %v619
        %v621 = vrot.slane %v441, %v620
        %vm622 = vcmask 523712
        %v623 = vsel %vm622, %v621, %v616
        %v624 = vadd.s32 %v570, 4294967232
        %v625 = vlaneseq
        %v626 = vshrl.u32 %v625, 7
        %v627 = vsub.s32 %v624, %v626
        %v628 = vrot.slane %v444, %v627
        %vm629 = vcmask 589312
        %v630 = vsel %vm629, %v628, %v623
        %v631 = vadd.s32 %v570, 4294967224
        %v632 = vlaneseq
        %v633 = vshrl.u32 %v632, 7
        %v634 = vsub.s32 %v631, %v633
        %v635 = vrot.slane %v447, %v634
        %vm636 = vcmask 654912
        %v637 = vsel %vm636, %v635, %v630
        %v638 = vadd.s32 %v570, 4294967216
        %v639 = vlaneseq
        %v640 = vshrl.u32 %v639, 7
        %v641 = vsub.s32 %v638, %v640
        %v642 = vrot.slane %v450, %v641
        %vm643 = vcmask 720512
        %v644 = vsel %vm643, %v642, %v637
        %v645 = vadd.s32 %v570, 4294967208
        %v646 = vlaneseq
        %v647 = vshrl.u32 %v646, 7
        %v648 = vsub.s32 %v645, %v647
        %v649 = vrot.slane %v453, %v648
        %vm650 = vcmask 786112
        %v651 = vsel %vm650, %v649, %v644
        %v652 = vadd.s32 %v570, 4294967200
        %v653 = vlaneseq
        %v654 = vshrl.u32 %v653, 7
        %v655 = vsub.s32 %v652, %v654
        %v656 = vrot.slane %v456, %v655
        %vm657 = vcmask 851712
        %v658 = vsel %vm657, %v656, %v651
        %v659 = vadd.s32 %v570, 4294967192
        %v660 = vlaneseq
        %v661 = vshrl.u32 %v660, 7
        %v662 = vsub.s32 %v659, %v661
        %v663 = vrot.slane %v459, %v662
        %vm664 = vcmask 917312
        %v665 = vsel %vm664, %v663, %v658
        %v666 = vadd.s32 %v570, 4294967184
        %v667 = vlaneseq
        %v668 = vshrl.u32 %v667, 7
        %v669 = vsub.s32 %v666, %v668
        %v670 = vrot.slane %v462, %v669
        %vm671 = vcmask 982912
        %v672 = vsel %vm671, %v670, %v665
        %v673 = vadd.s32 %v570, 4294967176
        %v674 = vlaneseq
        %v675 = vshrl.u32 %v674, 7
        %v676 = vsub.s32 %v673, %v675
        %v677 = vrot.slane %v465, %v676
        %vm678 = vcmask 1048512
        %v679 = vsel %vm678, %v677, %v672
        %v680 = vlaneseq
        %v681 = vshrl.u32 %v680, 7
        %v682 = vsub.s32 %v570, %v681
        %v683 = vrot.slane %v468, %v682
        %v684 = vlaneseq
        %v685 = vshrl.u32 %v684, 7
        %v686 = vsub.s32 %v575, %v685
        %v687 = vrot.slane %v471, %v686
        %v688 = vsel %vm580, %v687, %v683
        %v689 = vlaneseq
        %v690 = vshrl.u32 %v689, 7
        %v691 = vsub.s32 %v582, %v690
        %v692 = vrot.slane %v474, %v691
        %v693 = vsel %vm587, %v692, %v688
        %v694 = vlaneseq
        %v695 = vshrl.u32 %v694, 7
        %v696 = vsub.s32 %v589, %v695
        %v697 = vrot.slane %v477, %v696
        %v698 = vsel %vm594, %v697, %v693
        %v699 = vlaneseq
        %v700 = vshrl.u32 %v699, 7
        %v701 = vsub.s32 %v596, %v700
        %v702 = vrot.slane %v480, %v701
        %v703 = vsel %vm601, %v702, %v698
        %v704 = vlaneseq
        %v705 = vshrl.u32 %v704, 7
        %v706 = vsub.s32 %v603, %v705
        %v707 = vrot.slane %v483, %v706
        %v708 = vsel %vm608, %v707, %v703
        %v709 = vlaneseq
        %v710 = vshrl.u32 %v709, 7
        %v711 = vsub.s32 %v610, %v710
        %v712 = vrot.slane %v486, %v711
        %v713 = vsel %vm615, %v712, %v708
        %v714 = vlaneseq
        %v715 = vshrl.u32 %v714, 7
        %v716 = vsub.s32 %v617, %v715
        %v717 = vrot.slane %v489, %v716
        %v718 = vsel %vm622, %v717, %v713
        %v719 = vlaneseq
        %v720 = vshrl.u32 %v719, 7
        %v721 = vsub.s32 %v624, %v720
        %v722 = vrot.slane %v492, %v721
        %v723 = vsel %vm629, %v722, %v718
        %v724 = vlaneseq
        %v725 = vshrl.u32 %v724, 7
        %v726 = vsub.s32 %v631, %v725
        %v727 = vrot.slane %v495, %v726
        %v728 = vsel %vm636, %v727, %v723
        %v729 = vlaneseq
        %v730 = vshrl.u32 %v729, 7
        %v731 = vsub.s32 %v638, %v730
        %v732 = vrot.slane %v498, %v731
        %v733 = vsel %vm643, %v732, %v728
        %v734 = vlaneseq
        %v735 = vshrl.u32 %v734, 7
        %v736 = vsub.s32 %v645, %v735
        %v737 = vrot.slane %v501, %v736
        %v738 = vsel %vm650, %v737, %v733
        %v739 = vlaneseq
        %v740 = vshrl.u32 %v739, 7
        %v741 = vsub.s32 %v652, %v740
        %v742 = vrot.slane %v504, %v741
        %v743 = vsel %vm657, %v742, %v738
        %v744 = vlaneseq
        %v745 = vshrl.u32 %v744, 7
        %v746 = vsub.s32 %v659, %v745
        %v747 = vrot.slane %v507, %v746
        %v748 = vsel %vm664, %v747, %v743
        %v749 = vlaneseq
        %v750 = vshrl.u32 %v749, 7
        %v751 = vsub.s32 %v666, %v750
        %v752 = vrot.slane %v510, %v751
        %v753 = vsel %vm671, %v752, %v748
        %v754 = vlaneseq
        %v755 = vshrl.u32 %v754, 7
        %v756 = vsub.s32 %v673, %v755
        %v757 = vrot.slane %v513, %v756
        %v758 = vsel %vm678, %v757, %v753
        %vm759 = vcmask 1041409
        %v760 = vsel %vm759, %v758, %v679
        %762 = vmatprep.subr.mxu0 0.0
        %763 = vmatpush1.msra.mxu0 %v514
        %764 = vmatprep.subr.mxu0 0.0
        %765 = vmatpush1.msra.mxu0 %v515
        %766 = vmatprep.subr.mxu0 0.0
        %767 = vmatpush1.msra.mxu0 %v516
        %768 = vmatprep.subr.mxu0 0.0
        %769 = vmatpush1.msra.mxu0 %v517
        %770 = vmatprep.subr.mxu0 0.0
        %771 = vmatpush1.msra.mxu0 %v518
        %772 = vmatprep.subr.mxu0 0.0
        %773 = vmatpush1.msra.mxu0 %v519
        %774 = vmatprep.subr.mxu0 0.0
        %775 = vmatpush1.msra.mxu0 %v520
        %776 = vmatprep.subr.mxu0 0.0
        %777 = vmatpush1.msra.mxu0 %v521
        %778 = vmatprep.subr.mxu0 0.0
        %779 = vmatpush1.msra.mxu0 %v522
        %780 = vmatprep.subr.mxu0 0.0
        %781 = vmatpush1.msra.mxu0 %v523
        %782 = vmatprep.subr.mxu0 0.0
        %783 = vmatpush1.msra.mxu0 %v524
        %784 = vmatprep.subr.mxu0 0.0
        %785 = vmatpush1.msra.mxu0 %v525
        %786 = vmatprep.subr.mxu0 0.0
        %787 = vmatpush1.msra.mxu0 %v526
        %788 = vmatprep.subr.mxu0 0.0
        %789 = vmatpush1.msra.mxu0 %v527
        %790 = vmatprep.subr.mxu0 0.0
        %791 = vmatpush1.msra.mxu0 %v528
        %792 = vmatprep.subr.mxu0 0.0
        %793 = vmatpush1.msra.mxu0 %v529
        %794 = vmatprep.subr.mxu0 0.0
        %795 = vmatpush1.msra.mxu0 0.0
        %796 = vmatprep.subr.mxu0 0.0
        %797 = vmatpush1.msra.mxu0 0.0
        %798 = vmatprep.subr.mxu0 0.0
        %799 = vmatpush1.msra.mxu0 0.0
        %800 = vmatprep.subr.mxu0 0.0
        %801 = vmatpush1.msra.mxu0 0.0
        %802 = vmatprep.subr.mxu0 0.0
        %803 = vmatpush1.msra.mxu0 0.0
        %804 = vmatprep.subr.mxu0 0.0
        %805 = vmatpush1.msra.mxu0 0.0
        %806 = vmatprep.subr.mxu0 0.0
        %807 = vmatpush1.msra.mxu0 0.0
        %808 = vmatprep.subr.mxu0 0.0
        %809 = vmatpush1.msra.mxu0 0.0
        %810 = vmatprep.subr.mxu0 0.0
        %811 = vmatpush1.msra.mxu0 0.0
        %812 = vmatprep.subr.mxu0 0.0
        %813 = vmatpush1.msra.mxu0 0.0
        %814 = vmatprep.subr.mxu0 0.0
        %815 = vmatpush1.msra.mxu0 0.0
        %816 = vmatprep.subr.mxu0 0.0
        %817 = vmatpush1.msra.mxu0 0.0
        %818 = vmatprep.subr.mxu0 0.0
        %819 = vmatpush1.msra.mxu0 0.0
        %820 = vmatprep.subr.mxu0 0.0
        %821 = vmatpush1.msra.mxu0 0.0
        %822 = vmatprep.subr.mxu0 0.0
        %823 = vmatpush1.msra.mxu0 0.0
        %824 = vmatprep.subr.mxu0 0.0
        %825 = vmatpush1.msra.mxu0 0.0
        %826 = vmatprep.mubr.f32.mxu0 0.0
        %827 = vmatmul.mubr.f32.gmra.mrb[0].mxu0 %v760
        %v828 = vpop.f32.mrb[0].mxu0
        %v829 = vadd.f32 %v535, %v828
        %v830 = vpop.f32.mrb[0].mxu0
        %831 = vdwg.mxu0
        %v832 = vsub.f32 0.0, %v829
        %v833 = vmul.f32 %v832, 1.442695
        %v834 = vpow.pop %v833
        %v835 = vadd.f32 %v834, 1.0
        %v836 = vrcp.pop %v835
        %v837 = vmul.f32 1.0, %v836
        %v838 = vmul.f32 %v829, %v837
        %v839 = vld [vmem:[%s3] sm:$0xff]
        %v840 = vld [vmem:[%s4] sm:$0x1]
        %v842 = vlaneseq
        %v843 = vshrl.u32 %v842, 7
        %v844 = vsub.s32 0, %v843
        %v845 = vrot.slane %v840, %v844
        %vm847 = vcmask 64512
        %v849 = vsel %vm847, %v838, 0
        %851 = vmatprep.subr.mxu0 0.0
        %852 = vmatpush1.msra.mxu0 %v839
        %853 = vmatprep.subr.mxu0 0.0
        %854 = vmatpush1.msra.mxu0 0.0
        %855 = vmatprep.subr.mxu0 0.0
        %856 = vmatpush1.msra.mxu0 0.0
        %857 = vmatprep.subr.mxu0 0.0
        %858 = vmatpush1.msra.mxu0 0.0
        %859 = vmatprep.subr.mxu0 0.0
        %860 = vmatpush1.msra.mxu0 0.0
        %861 = vmatprep.subr.mxu0 0.0
        %862 = vmatpush1.msra.mxu0 0.0
        %863 = vmatprep.subr.mxu0 0.0
        %864 = vmatpush1.msra.mxu0 0.0
        %865 = vmatprep.subr.mxu0 0.0
        %866 = vmatpush1.msra.mxu0 0.0
        %867 = vmatprep.subr.mxu0 0.0
        %868 = vmatpush1.msra.mxu0 0.0
        %869 = vmatprep.subr.mxu0 0.0
        %870 = vmatpush1.msra.mxu0 0.0
        %871 = vmatprep.subr.mxu0 0.0
        %872 = vmatpush1.msra.mxu0 0.0
        %873 = vmatprep.subr.mxu0 0.0
        %874 = vmatpush1.msra.mxu0 0.0
        %875 = vmatprep.subr.mxu0 0.0
        %876 = vmatpush1.msra.mxu0 0.0
        %877 = vmatprep.subr.mxu0 0.0
        %878 = vmatpush1.msra.mxu0 0.0
        %879 = vmatprep.subr.mxu0 0.0
        %880 = vmatpush1.msra.mxu0 0.0
        %881 = vmatprep.subr.mxu0 0.0
        %882 = vmatpush1.msra.mxu0 0.0
        %883 = vmatprep.subr.mxu0 0.0
        %884 = vmatpush1.msra.mxu0 0.0
        %885 = vmatprep.subr.mxu0 0.0
        %886 = vmatpush1.msra.mxu0 0.0
        %887 = vmatprep.subr.mxu0 0.0
        %888 = vmatpush1.msra.mxu0 0.0
        %889 = vmatprep.subr.mxu0 0.0
        %890 = vmatpush1.msra.mxu0 0.0
        %891 = vmatprep.subr.mxu0 0.0
        %892 = vmatpush1.msra.mxu0 0.0
        %893 = vmatprep.subr.mxu0 0.0
        %894 = vmatpush1.msra.mxu0 0.0
        %895 = vmatprep.subr.mxu0 0.0
        %896 = vmatpush1.msra.mxu0 0.0
        %897 = vmatprep.subr.mxu0 0.0
        %898 = vmatpush1.msra.mxu0 0.0
        %899 = vmatprep.subr.mxu0 0.0
        %900 = vmatpush1.msra.mxu0 0.0
        %901 = vmatprep.subr.mxu0 0.0
        %902 = vmatpush1.msra.mxu0 0.0
        %903 = vmatprep.subr.mxu0 0.0
        %904 = vmatpush1.msra.mxu0 0.0
        %905 = vmatprep.subr.mxu0 0.0
        %906 = vmatpush1.msra.mxu0 0.0
        %907 = vmatprep.subr.mxu0 0.0
        %908 = vmatpush1.msra.mxu0 0.0
        %909 = vmatprep.subr.mxu0 0.0
        %910 = vmatpush1.msra.mxu0 0.0
        %911 = vmatprep.subr.mxu0 0.0
        %912 = vmatpush1.msra.mxu0 0.0
        %913 = vmatprep.subr.mxu0 0.0
        %914 = vmatpush1.msra.mxu0 0.0
        %915 = vmatprep.mubr.f32.mxu0 0.0
        %916 = vmatmul.mubr.f32.gmra.mrb[0].mxu0 %v849
        %v917 = vpop.f32.mrb[0].mxu0
        %v918 = vadd.f32 %v845, %v917
        %v919 = vpop.f32.mrb[0].mxu0
        %920 = vdwg.mxu0
        %v921 = vsub.f32 0.0, %v918
        %v922 = vmul.f32 %v921, 1.442695
        %v923 = vpow.pop %v922
        %v924 = vadd.f32 %v923, 1.0
        %v925 = vrcp.pop %v924
        %v926 = vmul.f32 1.0, %v925
        %v927 = vmul.f32 %v918, %v926
        %v928 = vld [vmem:[%s5] sm:$0xff]
        %v929 = vld [vmem:[%s6] sm:$0x1]
        %v931 = vlaneseq
        %v932 = vshrl.u32 %v931, 7
        %v933 = vsub.s32 0, %v932
        %v934 = vrot.slane %v929, %v933
        %v937 = vsel %vm847, %v927, 0
        %939 = vmatprep.subr.mxu0 0.0
        %940 = vmatpush1.msra.mxu0 %v928
        %941 = vmatprep.subr.mxu0 0.0
        %942 = vmatpush1.msra.mxu0 0.0
        %943 = vmatprep.subr.mxu0 0.0
        %944 = vmatpush1.msra.mxu0 0.0
        %945 = vmatprep.subr.mxu0 0.0
        %946 = vmatpush1.msra.mxu0 0.0
        %947 = vmatprep.subr.mxu0 0.0
        %948 = vmatpush1.msra.mxu0 0.0
        %949 = vmatprep.subr.mxu0 0.0
        %950 = vmatpush1.msra.mxu0 0.0
        %951 = vmatprep.subr.mxu0 0.0
        %952 = vmatpush1.msra.mxu0 0.0
        %953 = vmatprep.subr.mxu0 0.0
        %954 = vmatpush1.msra.mxu0 0.0
        %955 = vmatprep.subr.mxu0 0.0
        %956 = vmatpush1.msra.mxu0 0.0
        %957 = vmatprep.subr.mxu0 0.0
        %958 = vmatpush1.msra.mxu0 0.0
        %959 = vmatprep.subr.mxu0 0.0
        %960 = vmatpush1.msra.mxu0 0.0
        %961 = vmatprep.subr.mxu0 0.0
        %962 = vmatpush1.msra.mxu0 0.0
        %963 = vmatprep.subr.mxu0 0.0
        %964 = vmatpush1.msra.mxu0 0.0
        %965 = vmatprep.subr.mxu0 0.0
        %966 = vmatpush1.msra.mxu0 0.0
        %967 = vmatprep.subr.mxu0 0.0
        %968 = vmatpush1.msra.mxu0 0.0
        %969 = vmatprep.subr.mxu0 0.0
        %970 = vmatpush1.msra.mxu0 0.0
        %971 = vmatprep.subr.mxu0 0.0
        %972 = vmatpush1.msra.mxu0 0.0
        %973 = vmatprep.subr.mxu0 0.0
        %974 = vmatpush1.msra.mxu0 0.0
        %975 = vmatprep.subr.mxu0 0.0
        %976 = vmatpush1.msra.mxu0 0.0
        %977 = vmatprep.subr.mxu0 0.0
        %978 = vmatpush1.msra.mxu0 0.0
        %979 = vmatprep.subr.mxu0 0.0
        %980 = vmatpush1.msra.mxu0 0.0
        %981 = vmatprep.subr.mxu0 0.0
        %982 = vmatpush1.msra.mxu0 0.0
        %983 = vmatprep.subr.mxu0 0.0
        %984 = vmatpush1.msra.mxu0 0.0
        %985 = vmatprep.subr.mxu0 0.0
        %986 = vmatpush1.msra.mxu0 0.0
        %987 = vmatprep.subr.mxu0 0.0
        %988 = vmatpush1.msra.mxu0 0.0
        %989 = vmatprep.subr.mxu0 0.0
        %990 = vmatpush1.msra.mxu0 0.0
        %991 = vmatprep.subr.mxu0 0.0
        %992 = vmatpush1.msra.mxu0 0.0
        %993 = vmatprep.subr.mxu0 0.0
        %994 = vmatpush1.msra.mxu0 0.0
        %995 = vmatprep.subr.mxu0 0.0
        %996 = vmatpush1.msra.mxu0 0.0
        %997 = vmatprep.subr.mxu0 0.0
        %998 = vmatpush1.msra.mxu0 0.0
        %999 = vmatprep.subr.mxu0 0.0
        %1000 = vmatpush1.msra.mxu0 0.0
        %1001 = vmatprep.subr.mxu0 0.0
        %1002 = vmatpush1.msra.mxu0 0.0
        %1003 = vmatprep.mubr.f32.mxu0 0.0
        %1004 = vmatmul.mubr.f32.gmra.mrb[0].mxu0 %v937
        %v1005 = vpop.f32.mrb[0].mxu0
        %v1006 = vadd.f32 %v934, %v1005
        %v1007 = vpop.f32.mrb[0].mxu0
        %1008 = vdwg.mxu0
        %v1009 = vsub.f32 0.0, %v1006
        %v1010 = vmul.f32 %v1009, 1.442695
        %v1011 = vpow.pop %v1010
        %v1012 = vadd.f32 %v1011, 1.0
        %v1013 = vrcp.pop %v1012
        %v1014 = vmul.f32 1.0, %v1013
        %v1015 = vmul.f32 %v1006, %v1014
        %v1016 = vld [vmem:[%s7] sm:$0xff]
        %v1017 = vld [vmem:[%s8] sm:$0x1]
        %v1019 = vlaneseq
        %v1020 = vshrl.u32 %v1019, 7
        %v1021 = vsub.s32 0, %v1020
        %v1022 = vrot.slane %v1017, %v1021
        %v1025 = vsel %vm847, %v1015, 0
        %1027 = vmatprep.subr.mxu0 0.0
        %1028 = vmatpush1.msra.mxu0 %v1016
        %1029 = vmatprep.subr.mxu0 0.0
        %1030 = vmatpush1.msra.mxu0 0.0
        %1031 = vmatprep.subr.mxu0 0.0
        %1032 = vmatpush1.msra.mxu0 0.0
        %1033 = vmatprep.subr.mxu0 0.0
        %1034 = vmatpush1.msra.mxu0 0.0
        %1035 = vmatprep.subr.mxu0 0.0
        %1036 = vmatpush1.msra.mxu0 0.0
        %1037 = vmatprep.subr.mxu0 0.0
        %1038 = vmatpush1.msra.mxu0 0.0
        %1039 = vmatprep.subr.mxu0 0.0
        %1040 = vmatpush1.msra.mxu0 0.0
        %1041 = vmatprep.subr.mxu0 0.0
        %1042 = vmatpush1.msra.mxu0 0.0
        %1043 = vmatprep.subr.mxu0 0.0
        %1044 = vmatpush1.msra.mxu0 0.0
        %1045 = vmatprep.subr.mxu0 0.0
        %1046 = vmatpush1.msra.mxu0 0.0
        %1047 = vmatprep.subr.mxu0 0.0
        %1048 = vmatpush1.msra.mxu0 0.0
        %1049 = vmatprep.subr.mxu0 0.0
        %1050 = vmatpush1.msra.mxu0 0.0
        %1051 = vmatprep.subr.mxu0 0.0
        %1052 = vmatpush1.msra.mxu0 0.0
        %1053 = vmatprep.subr.mxu0 0.0
        %1054 = vmatpush1.msra.mxu0 0.0
        %1055 = vmatprep.subr.mxu0 0.0
        %1056 = vmatpush1.msra.mxu0 0.0
        %1057 = vmatprep.subr.mxu0 0.0
        %1058 = vmatpush1.msra.mxu0 0.0
        %1059 = vmatprep.subr.mxu0 0.0
        %1060 = vmatpush1.msra.mxu0 0.0
        %1061 = vmatprep.subr.mxu0 0.0
        %1062 = vmatpush1.msra.mxu0 0.0
        %1063 = vmatprep.subr.mxu0 0.0
        %1064 = vmatpush1.msra.mxu0 0.0
        %1065 = vmatprep.subr.mxu0 0.0
        %1066 = vmatpush1.msra.mxu0 0.0
        %1067 = vmatprep.subr.mxu0 0.0
        %1068 = vmatpush1.msra.mxu0 0.0
        %1069 = vmatprep.subr.mxu0 0.0
        %1070 = vmatpush1.msra.mxu0 0.0
        %1071 = vmatprep.subr.mxu0 0.0
        %1072 = vmatpush1.msra.mxu0 0.0
        %1073 = vmatprep.subr.mxu0 0.0
        %1074 = vmatpush1.msra.mxu0 0.0
        %1075 = vmatprep.subr.mxu0 0.0
        %1076 = vmatpush1.msra.mxu0 0.0
        %1077 = vmatprep.subr.mxu0 0.0
        %1078 = vmatpush1.msra.mxu0 0.0
        %1079 = vmatprep.subr.mxu0 0.0
        %1080 = vmatpush1.msra.mxu0 0.0
        %1081 = vmatprep.subr.mxu0 0.0
        %1082 = vmatpush1.msra.mxu0 0.0
        %1083 = vmatprep.subr.mxu0 0.0
        %1084 = vmatpush1.msra.mxu0 0.0
        %1085 = vmatprep.subr.mxu0 0.0
        %1086 = vmatpush1.msra.mxu0 0.0
        %1087 = vmatprep.subr.mxu0 0.0
        %1088 = vmatpush1.msra.mxu0 0.0
        %1089 = vmatprep.subr.mxu0 0.0
        %1090 = vmatpush1.msra.mxu0 0.0
        %1091 = vmatprep.mubr.f32.mxu0 0.0
        %1092 = vmatmul.mubr.f32.gmra.mrb[0].mxu0 %v1025
        %v1093 = vpop.f32.mrb[0].mxu0
        %v1094 = vadd.f32 %v1022, %v1093
        %v1095 = vpop.f32.mrb[0].mxu0
        %1096 = vdwg.mxu0
        %v1097 = vlaneseq
        %v1098 = vshrl.u32 %v1097, 7
        %v1099 = vsub.s32 0, %v1098
        %v1100 = vrot.slane %v1094, %v1099
        %1102 = vbcast.lane.b32.xlu0 %v1100, 256
        %v1103 = vpop.permute.xlu0 %1102
        %s1105 = sor.u32 256, 8
        %1106 = vbcast.lane.b32.xlu0 %v1100, %s1105
        %v1107 = vpop.permute.xlu0 %1106
        %s1109 = sor.u32 256, 16
        %1110 = vbcast.lane.b32.xlu0 %v1100, %s1109
        %v1111 = vpop.permute.xlu0 %1110
        %s1113 = sor.u32 256, 24
        %1114 = vbcast.lane.b32.xlu0 %v1100, %s1113
        %v1115 = vpop.permute.xlu0 %1114
        %s1117 = sor.u32 256, 32
        %1118 = vbcast.lane.b32.xlu0 %v1100, %s1117
        %v1119 = vpop.permute.xlu0 %1118
        %s1121 = sor.u32 256, 40
        %1122 = vbcast.lane.b32.xlu0 %v1100, %s1121
        %v1123 = vpop.permute.xlu0 %1122
        %s1125 = sor.u32 256, 48
        %1126 = vbcast.lane.b32.xlu0 %v1100, %s1125
        %v1127 = vpop.permute.xlu0 %1126
        %s1129 = sor.u32 256, 56
        %1130 = vbcast.lane.b32.xlu0 %v1100, %s1129
        %v1131 = vpop.permute.xlu0 %1130
        %s1133 = sor.u32 256, 64
        %1134 = vbcast.lane.b32.xlu0 %v1100, %s1133
        %v1135 = vpop.permute.xlu0 %1134
        %s1137 = sor.u32 256, 72
        %1138 = vbcast.lane.b32.xlu0 %v1100, %s1137
        %v1139 = vpop.permute.xlu0 %1138
        %s1141 = sor.u32 256, 80
        %1142 = vbcast.lane.b32.xlu0 %v1100, %s1141
        %v1143 = vpop.permute.xlu0 %1142
        %s1145 = sor.u32 256, 88
        %1146 = vbcast.lane.b32.xlu0 %v1100, %s1145
        %v1147 = vpop.permute.xlu0 %1146
        %s1149 = sor.u32 256, 96
        %1150 = vbcast.lane.b32.xlu0 %v1100, %s1149
        %v1151 = vpop.permute.xlu0 %1150
        %s1153 = sor.u32 256, 104
        %1154 = vbcast.lane.b32.xlu0 %v1100, %s1153
        %v1155 = vpop.permute.xlu0 %1154
        %s1157 = sor.u32 256, 112
        %1158 = vbcast.lane.b32.xlu0 %v1100, %s1157
        %v1159 = vpop.permute.xlu0 %1158
        %s1161 = sor.u32 256, 120
        %1162 = vbcast.lane.b32.xlu0 %v1100, %s1161
        %v1163 = vpop.permute.xlu0 %1162
        %v1164 = vlaneseq
        %v1165 = vshrl.u32 %v1164, 7
        %v1166 = vsub.s32 1, %v1165
        %v1167 = vrot.slane %v1094, %v1166
        %1169 = vbcast.lane.b32.xlu0 %v1167, 256
        %v1170 = vpop.permute.xlu0 %1169
        %s1172 = sor.u32 256, 8
        %1173 = vbcast.lane.b32.xlu0 %v1167, %s1172
        %v1174 = vpop.permute.xlu0 %1173
        %s1176 = sor.u32 256, 16
        %1177 = vbcast.lane.b32.xlu0 %v1167, %s1176
        %v1178 = vpop.permute.xlu0 %1177
        %s1180 = sor.u32 256, 24
        %1181 = vbcast.lane.b32.xlu0 %v1167, %s1180
        %v1182 = vpop.permute.xlu0 %1181
        %s1184 = sor.u32 256, 32
        %1185 = vbcast.lane.b32.xlu0 %v1167, %s1184
        %v1186 = vpop.permute.xlu0 %1185
        %s1188 = sor.u32 256, 40
        %1189 = vbcast.lane.b32.xlu0 %v1167, %s1188
        %v1190 = vpop.permute.xlu0 %1189
        %s1192 = sor.u32 256, 48
        %1193 = vbcast.lane.b32.xlu0 %v1167, %s1192
        %v1194 = vpop.permute.xlu0 %1193
        %s1196 = sor.u32 256, 56
        %1197 = vbcast.lane.b32.xlu0 %v1167, %s1196
        %v1198 = vpop.permute.xlu0 %1197
        %s1200 = sor.u32 256, 64
        %1201 = vbcast.lane.b32.xlu0 %v1167, %s1200
        %v1202 = vpop.permute.xlu0 %1201
        %s1204 = sor.u32 256, 72
        %1205 = vbcast.lane.b32.xlu0 %v1167, %s1204
        %v1206 = vpop.permute.xlu0 %1205
        %s1208 = sor.u32 256, 80
        %1209 = vbcast.lane.b32.xlu0 %v1167, %s1208
        %v1210 = vpop.permute.xlu0 %1209
        %s1212 = sor.u32 256, 88
        %1213 = vbcast.lane.b32.xlu0 %v1167, %s1212
        %v1214 = vpop.permute.xlu0 %1213
        %s1216 = sor.u32 256, 96
        %1217 = vbcast.lane.b32.xlu0 %v1167, %s1216
        %v1218 = vpop.permute.xlu0 %1217
        %s1220 = sor.u32 256, 104
        %1221 = vbcast.lane.b32.xlu0 %v1167, %s1220
        %v1222 = vpop.permute.xlu0 %1221
        %s1224 = sor.u32 256, 112
        %1225 = vbcast.lane.b32.xlu0 %v1167, %s1224
        %v1226 = vpop.permute.xlu0 %1225
        %s1228 = sor.u32 256, 120
        %1229 = vbcast.lane.b32.xlu0 %v1167, %s1228
        %v1230 = vpop.permute.xlu0 %1229
        %1231 = vst [vmem:[%s351] sm:$0xff] %v1103
        %1232 = vst [vmem:[%s351 + $0x8] sm:$0xff] %v1103
        %1233 = vst [vmem:[%s351 + $0x10] sm:$0xff] %v1107
        %1234 = vst [vmem:[%s351 + $0x18] sm:$0xff] %v1107
        %1235 = vst [vmem:[%s351 + $0x20] sm:$0xff] %v1111
        %1236 = vst [vmem:[%s351 + $0x28] sm:$0xff] %v1111
        %1237 = vst [vmem:[%s351 + $0x30] sm:$0xff] %v1115
        %1238 = vst [vmem:[%s351 + $0x38] sm:$0xff] %v1115
        %1239 = vst [vmem:[%s351 + $0x40] sm:$0xff] %v1119
        %1240 = vst [vmem:[%s351 + $0x48] sm:$0xff] %v1119
        %1241 = vst [vmem:[%s351 + $0x50] sm:$0xff] %v1123
        %1242 = vst [vmem:[%s351 + $0x58] sm:$0xff] %v1123
        %1243 = vst [vmem:[%s351 + $0x60] sm:$0xff] %v1127
        %1244 = vst [vmem:[%s351 + $0x68] sm:$0xff] %v1127
        %1245 = vst [vmem:[%s351 + $0x70] sm:$0xff] %v1131
        %1246 = vst [vmem:[%s351 + $0x78] sm:$0xff] %v1131
        %1247 = vst [vmem:[%s351 + $0x80] sm:$0xff] %v1135
        %1248 = vst [vmem:[%s351 + $0x88] sm:$0xff] %v1135
        %1249 = vst [vmem:[%s351 + $0x90] sm:$0xff] %v1139
        %1250 = vst [vmem:[%s351 + $0x98] sm:$0xff] %v1139
        %1251 = vst [vmem:[%s351 + $0xa0] sm:$0xff] %v1143
        %1252 = vst [vmem:[%s351 + $0xa8] sm:$0xff] %v1143
        %1253 = vst [vmem:[%s351 + $0xb0] sm:$0xff] %v1147
        %1254 = vst [vmem:[%s351 + $0xb8] sm:$0xff] %v1147
        %1255 = vst [vmem:[%s351 + $0xc0] sm:$0xff] %v1151
        %1256 = vst [vmem:[%s351 + $0xc8] sm:$0xff] %v1151
        %1257 = vst [vmem:[%s351 + $0xd0] sm:$0xff] %v1155
        %1258 = vst [vmem:[%s351 + $0xd8] sm:$0xff] %v1155
        %1259 = vst [vmem:[%s351 + $0xe0] sm:$0xff] %v1159
        %1260 = vst [vmem:[%s351 + $0xe8] sm:$0xff] %v1159
        %1261 = vst [vmem:[%s351 + $0xf0] sm:$0xff] %v1163
        %1262 = vst [vmem:[%s351 + $0xf8] sm:$0xff] %v1163
        %1263 = vst [vmem:[%s351 + $0x100] sm:$0xff] %v1170
        %1264 = vst [vmem:[%s351 + $0x108] sm:$0xff] %v1170
        %1265 = vst [vmem:[%s351 + $0x110] sm:$0xff] %v1174
        %1266 = vst [vmem:[%s351 + $0x118] sm:$0xff] %v1174
        %1267 = vst [vmem:[%s351 + $0x120] sm:$0xff] %v1178
        %1268 = vst [vmem:[%s351 + $0x128] sm:$0xff] %v1178
        %1269 = vst [vmem:[%s351 + $0x130] sm:$0xff] %v1182
        %1270 = vst [vmem:[%s351 + $0x138] sm:$0xff] %v1182
        %1271 = vst [vmem:[%s351 + $0x140] sm:$0xff] %v1186
        %1272 = vst [vmem:[%s351 + $0x148] sm:$0xff] %v1186
        %1273 = vst [vmem:[%s351 + $0x150] sm:$0xff] %v1190
        %1274 = vst [vmem:[%s351 + $0x158] sm:$0xff] %v1190
        %1275 = vst [vmem:[%s351 + $0x160] sm:$0xff] %v1194
        %1276 = vst [vmem:[%s351 + $0x168] sm:$0xff] %v1194
        %1277 = vst [vmem:[%s351 + $0x170] sm:$0xff] %v1198
        %1278 = vst [vmem:[%s351 + $0x178] sm:$0xff] %v1198
        %1279 = vst [vmem:[%s351 + $0x180] sm:$0xff] %v1202
        %1280 = vst [vmem:[%s351 + $0x188] sm:$0xff] %v1202
        %1281 = vst [vmem:[%s351 + $0x190] sm:$0xff] %v1206
        %1282 = vst [vmem:[%s351 + $0x198] sm:$0xff] %v1206
        %1283 = vst [vmem:[%s351 + $0x1a0] sm:$0xff] %v1210
        %1284 = vst [vmem:[%s351 + $0x1a8] sm:$0xff] %v1210
        %1285 = vst [vmem:[%s351 + $0x1b0] sm:$0xff] %v1214
        %1286 = vst [vmem:[%s351 + $0x1b8] sm:$0xff] %v1214
        %1287 = vst [vmem:[%s351 + $0x1c0] sm:$0xff] %v1218
        %1288 = vst [vmem:[%s351 + $0x1c8] sm:$0xff] %v1218
        %1289 = vst [vmem:[%s351 + $0x1d0] sm:$0xff] %v1222
        %1290 = vst [vmem:[%s351 + $0x1d8] sm:$0xff] %v1222
        %1291 = vst [vmem:[%s351 + $0x1e0] sm:$0xff] %v1226
        %1292 = vst [vmem:[%s351 + $0x1e8] sm:$0xff] %v1226
        %1293 = vst [vmem:[%s351 + $0x1f0] sm:$0xff] %v1230
        %1294 = vst [vmem:[%s351 + $0x1f8] sm:$0xff] %v1230
        %s1295 = sand.u32 %s228, 1
        %s1296 = scalar_lea.sflag [#allocation4], %s1295
        %s1297 = sand.u32 %s228, 1
        %s1298 = smul.addr %s1297, 512
        %s1299 = scalar_lea.vmem [#allocation5], %s1298
        // Predicated region
        $region61: #{tpu_custom_call.1} parent=55 // pred_check
          %p1300 = pneg %p238
        $region62: #{tpu_custom_call.1} parent=55 // pred_check_branch
          %1302 = sbr.rel (%p1300) target = $region64
        $region63: #{tpu_custom_call.1} parent=55 // pred_region
          %s1303 = smul.u32 2, %s26
          %s1305 = ssub.s32 8192, 8192
          %1306 = vsyncadd %s1296, %s1305
          %s1307 = smul.addr %s1303, 32
          %s1308 = smul.addr %s1307, 128
          %s1309 = scalar_lea.hbm %s9, %s1308
          %s1310 = sshll.u32 %s1299, 4
          %s1311 = int_to_ptr.vmem [resolvable:$true] %s1310
          %1316 = dma.vmem_to_hbm [thread:$0]  %s1311, 8192, %s1309, %s1296, 256, 256, 16
        $region64: #{tpu_custom_call.1} parent=55 // pred_fallthru
          _
      $region56: #{tpu_custom_call.1} parent=5 // pred_fallthru
        _
      %p1317 = scmp.le.s32.totalorder 2, %s21
      // Predicated region
      $region65: #{tpu_custom_call.1} parent=5 // pred_check
        %p1318 = pneg %p1317
      $region66: #{tpu_custom_call.1} parent=5 // pred_check_branch
        %1320 = sbr.rel (%p1318) target = $region68
      $region67: #{tpu_custom_call.1} parent=5 // pred_region
        %s1321 = ssub.s32 %s21, 2
        // Predicated region
        $region69: #{tpu_custom_call.1} parent=67 // pred_check
          %p1322 = pneg %p244
        $region70: #{tpu_custom_call.1} parent=67 // pred_check_branch
          %1324 = sbr.rel (%p1322) target = $region72
        $region71: #{tpu_custom_call.1} parent=67 // pred_region
          %s1325 = sand.u32 %s229, 1
          %s1326 = scalar_lea.sflag [#allocation4], %s1325
          %s1327 = sand.u32 %s229, 1
          %s1328 = smul.addr %s1327, 512
          %s1329 = scalar_lea.vmem [#allocation5], %s1328
          %1330 = dma.done %s1326, 8192
        $region72: #{tpu_custom_call.1} parent=67 // pred_fallthru
          _
      $region68: #{tpu_custom_call.1} parent=5 // pred_fallthru
        _
    $region6: #{tpu_custom_call.1} parent=1 // loop_footer
      %s25 = sadd.s32 1, %s21
    $region7: #{tpu_custom_call.1} parent=1 // loop_footer_branch
      %20 = sbr.rel target = $region3
    $region8: #{tpu_custom_call.1} parent=1 // loop_exit
      _
    %1331 = vsyncpa [#allocation3], 1
    %s1332 = scalar_lea.sflag [#allocation3], 1
    %1333 = vsyncpa %s1332, 1
    %1334 = vsyncpa [#allocation4], 1
    %s1335 = scalar_lea.sflag [#allocation4], 1
    %1336 = vsyncpa %s1335, 1

</llo_original>
